<compile_context>
chip_gen: v5e
topology: v5e:2x2
jax: 0.10.0
libtpu: 0.0.40
codegen_flags: <defaults>
</compile_context>

<pallas_src>
import functools

import jax
import jax.numpy as jnp
from jax.experimental import pallas as pl
from jax.experimental.pallas import tpu as pltpu


def mha_kernel(x_ref, mask_ref, wq_ref, bq_ref, wk_ref, bk_ref, wv_ref, bv_ref,
               wl_ref, bl_ref, g_ref, beta_ref, o_ref, acc_ref,
               *, bt, seq_len, eps):
    h = pl.program_id(1)
    nh = pl.num_programs(1)

    @pl.when(h == 0)
    def _init():
        acc_ref[...] = jnp.zeros_like(acc_ref)

    d_in = x_ref.shape[-1]
    n = bt * seq_len

    # ---- per-head QKV projections on the packed [bt*S, D_in] slab (bf16 MXU) --
    xb = x_ref[...].reshape(n, d_in).astype(jnp.bfloat16)
    wq = wq_ref[0].astype(jnp.bfloat16)                  # [D_in, D]
    wk = wk_ref[0].astype(jnp.bfloat16)
    wv = wv_ref[0].astype(jnp.bfloat16)

    q = jnp.dot(xb, wq, preferred_element_type=jnp.float32) + bq_ref[0]   # [N, D]
    k = jnp.dot(xb, wk, preferred_element_type=jnp.float32) + bk_ref[0]
    v = jnp.dot(xb, wv, preferred_element_type=jnp.float32) + bv_ref[0]

    # PyTorch scales by query.size(1)**0.5 == sqrt(seq_len); fold it into Q once.
    q = q * (1.0 / (seq_len ** 0.5))

    d = q.shape[-1]
    q3 = q.reshape(bt, seq_len, d).astype(jnp.bfloat16)
    k3 = k.reshape(bt, seq_len, d).astype(jnp.bfloat16)
    v3 = v.reshape(bt, seq_len, d).astype(jnp.bfloat16)

    # ---- attention: batched over packed batch dim, contract on D (no K.T) -----
    scores = jnp.einsum('bqd,bkd->bqk', q3, k3,
                        preferred_element_type=jnp.float32)   # [bt, S, S] f32
    mask = mask_ref[...]                                      # [bt, 1, S]
    scores = jnp.where(mask == 0, jnp.float32(-1e9), scores)  # == masked_fill

    m = jnp.max(scores, axis=-1, keepdims=True)
    e = jnp.exp(scores - m)
    denom = jnp.sum(e, axis=-1, keepdims=True)                # [bt, S, 1]

    ctx = jnp.einsum('bqk,bkd->bqd', e.astype(jnp.bfloat16), v3,
                     preferred_element_type=jnp.float32)      # [bt, S, D]
    # Deferred softmax normalization on the small [*,S,D] tensor (EUP recip).
    ctx = ctx * pl.reciprocal(denom, approx=True)

    # ---- accumulate this head's output-projection contribution ---------------
    ctx2 = ctx.reshape(n, d).astype(jnp.bfloat16)
    wl = wl_ref[0].astype(jnp.bfloat16)                       # [D, D_in]
    acc_ref[...] += jnp.dot(ctx2, wl, preferred_element_type=jnp.float32)

    # ---- last head: bias + LayerNorm + store ----------------------------------
    @pl.when(h == nh - 1)
    def _finish():
        y = acc_ref[...] + bl_ref[...]                        # [N, D_in]
        mu = jnp.mean(y, axis=-1, keepdims=True)
        var = jnp.mean((y - mu) ** 2, axis=-1, keepdims=True)
        yn = (y - mu) * jax.lax.rsqrt(var + eps)
        yn = yn * g_ref[...] + beta_ref[...]
        o_ref[...] = yn.reshape(bt, seq_len, d_in).astype(o_ref.dtype)


def multi_head_attention(x, attention_mask, params, *, num_heads, dim_out,
                         block_b=None):
    """x: [B, S, D_in] f32, attention_mask: [B, S] int (0 = masked).

    params: (wq, bq, wk, bk, wv, bv, wl, bl, gamma, beta) with per-head layout
      wq/wk/wv: [H, D_in, D]   bq/bk/bv: [H, 1, D]
      wl:       [H, D, D_in]   bl/gamma/beta: [1, D_in]
    """
    B, S, D_in = x.shape
    H, D = num_heads, dim_out

    # Pack enough batch rows per grid step to fill the MXU M dimension.
    if block_b is None:
        block_b = max(1, min(B, -(-256 // S)))
    while B % block_b:
        block_b -= 1
    nb = B // block_b

    mask3 = attention_mask.reshape(B, 1, S).astype(jnp.int32)
    wq, bq, wk, bk, wv, bv, wl, bl, gamma, beta = params

    per_head_w = lambda shp: pl.BlockSpec(shp, lambda b, h: (h, 0, 0))
    const2d = lambda shp: pl.BlockSpec(shp, lambda b, h: (0, 0))

    kern = functools.partial(mha_kernel, bt=block_b, seq_len=S, eps=1e-5)

    return pl.pallas_call(
        kern,
        out_shape=jax.ShapeDtypeStruct((B, S, D_in), jnp.float32),
        grid=(nb, H),
        in_specs=[
            pl.BlockSpec((block_b, S, D_in), lambda b, h: (b, 0, 0)),   # x
            pl.BlockSpec((block_b, 1, S), lambda b, h: (b, 0, 0)),      # mask
            per_head_w((1, D_in, D)), per_head_w((1, 1, D)),            # Wq, bq
            per_head_w((1, D_in, D)), per_head_w((1, 1, D)),            # Wk, bk
            per_head_w((1, D_in, D)), per_head_w((1, 1, D)),            # Wv, bv
            per_head_w((1, D, D_in)), const2d((1, D_in)),               # Wl, bl
            const2d((1, D_in)), const2d((1, D_in)),                     # gamma, beta
        ],
        out_specs=pl.BlockSpec((block_b, S, D_in), lambda b, h: (b, 0, 0)),
        scratch_shapes=[pltpu.VMEM((block_b * S, D_in), jnp.float32)],
        compiler_params=pltpu.CompilerParams(
            dimension_semantics=("parallel", "arbitrary")),
    )(x, mask3, wq, bq, wk, bk, wv, bv, wl, bl, gamma, beta)


def reference(x, attention_mask, params, *, num_heads, dim_out):
    """Pure-JAX fp32 reference mirroring the PyTorch module."""
    B, S, D_in = x.shape
    wq, bq, wk, bk, wv, bv, wl, bl, gamma, beta = params
    scale = S ** 0.5
    mask = attention_mask[:, None, :]          # [B,1,S]
    y = jnp.zeros((B, S, D_in), jnp.float32)
    for h in range(num_heads):
        q = x @ wq[h] + bq[h]
        k = x @ wk[h] + bk[h]
        v = x @ wv[h] + bv[h]
        s = jnp.einsum('bqd,bkd->bqk', q, k) / scale
        s = jnp.where(mask == 0, -1e9, s)
        a = jax.nn.softmax(s, axis=-1)
        ctx = jnp.einsum('bqk,bkd->bqd', a, v)
        y = y + ctx @ wl[h]
    y = y + bl
    mu = jnp.mean(y, axis=-1, keepdims=True)
    var = jnp.mean((y - mu) ** 2, axis=-1, keepdims=True)
    return (y - mu) / jnp.sqrt(var + 1e-5) * gamma + beta


if __name__ == "__main__":
    # Small shapes consistent with the module's forward.
    B, S = 2, 8
    num_heads, dim_inp, dim_out = 4, 32, 16

    key = jax.random.PRNGKey(0)
    keys = jax.random.split(key, 12)

    # Deterministic synthetic parameters in per-head layout (y = x @ W + b).
    wq = jax.random.normal(keys[0], (num_heads, dim_inp, dim_out), jnp.float32) * 0.05
    bq = jax.random.normal(keys[1], (num_heads, 1, dim_out), jnp.float32) * 0.05
    wk = jax.random.normal(keys[2], (num_heads, dim_inp, dim_out), jnp.float32) * 0.05
    bk = jax.random.normal(keys[3], (num_heads, 1, dim_out), jnp.float32) * 0.05
    wv = jax.random.normal(keys[4], (num_heads, dim_inp, dim_out), jnp.float32) * 0.05
    bv = jax.random.normal(keys[5], (num_heads, 1, dim_out), jnp.float32) * 0.05
    wl = jax.random.normal(keys[6], (num_heads, dim_out, dim_inp), jnp.float32) * 0.05
    bl = jax.random.normal(keys[7], (1, dim_inp), jnp.float32) * 0.05
    gamma = jnp.ones((1, dim_inp), jnp.float32)
    beta = jnp.zeros((1, dim_inp), jnp.float32)
    params = (wq, bq, wk, bk, wv, bv, wl, bl, gamma, beta)

    x = jax.random.normal(keys[8], (B, S, dim_inp), jnp.float32)
    # attention_mask: 1 = attend, 0 = masked (last 2 positions of batch 1 masked)
    attention_mask = jnp.ones((B, S), jnp.int32).at[1, -2:].set(0)

    out = multi_head_attention(x, attention_mask, params,
                               num_heads=num_heads, dim_out=dim_out)
    out = jax.block_until_ready(out)

    ref = reference(x, attention_mask, params,
                    num_heads=num_heads, dim_out=dim_out)
    assert out.shape == (B, S, dim_inp)
    # Kernel runs matmul operands in bf16 (f32 accumulate) vs. a pure-f32
    # reference, so the tolerance is set to bf16-level accuracy.
    err = float(jnp.max(jnp.abs(out - ref)))
    assert err < 8e-2, f"mismatch vs reference: max abs err = {err}"

    print("KERNEL_OK")
</pallas_src>

<mosaic_0001>
module attributes {stable_mosaic.version = 11 : i64} {
  func.func @mha_kernel(%arg0: i32, %arg1: i32, %arg2: memref<2x8x32xf32, #tpu.memory_space<vmem>>, %arg3: memref<2x1x8xi32, #tpu.memory_space<vmem>>, %arg4: memref<1x32x16xf32, #tpu.memory_space<vmem>>, %arg5: memref<1x1x16xf32, #tpu.memory_space<vmem>>, %arg6: memref<1x32x16xf32, #tpu.memory_space<vmem>>, %arg7: memref<1x1x16xf32, #tpu.memory_space<vmem>>, %arg8: memref<1x32x16xf32, #tpu.memory_space<vmem>>, %arg9: memref<1x1x16xf32, #tpu.memory_space<vmem>>, %arg10: memref<1x16x32xf32, #tpu.memory_space<vmem>>, %arg11: memref<1x32xf32, #tpu.memory_space<vmem>>, %arg12: memref<1x32xf32, #tpu.memory_space<vmem>>, %arg13: memref<1x32xf32, #tpu.memory_space<vmem>>, %arg14: memref<2x8x32xf32, #tpu.memory_space<vmem>>, %arg15: memref<16x32xf32, #tpu.memory_space<vmem>>) attributes {dimension_semantics = [#tpu.dimension_semantics<parallel>, #tpu.dimension_semantics<arbitrary>], iteration_bounds = array<i64: 1, 4>, scalar_prefetch = 0 : i64, scratch_operands = 1 : i64, tpu.core_type = #tpu.core_type<tc>, window_params = [{transform_indices = @transform_0, window_bounds = array<i64: 2, 8, 32>}, {transform_indices = @transform_1, window_bounds = array<i64: 2, 1, 8>}, {transform_indices = @transform_2, window_bounds = array<i64: 1, 32, 16>}, {transform_indices = @transform_3, window_bounds = array<i64: 1, 1, 16>}, {transform_indices = @transform_4, window_bounds = array<i64: 1, 32, 16>}, {transform_indices = @transform_5, window_bounds = array<i64: 1, 1, 16>}, {transform_indices = @transform_6, window_bounds = array<i64: 1, 32, 16>}, {transform_indices = @transform_7, window_bounds = array<i64: 1, 1, 16>}, {transform_indices = @transform_8, window_bounds = array<i64: 1, 16, 32>}, {pipeline_mode = #tpu.pipeline_mode<synchronous>, transform_indices = @transform_9, window_bounds = array<i64: 1, 32>}, {pipeline_mode = #tpu.pipeline_mode<synchronous>, transform_indices = @transform_10, window_bounds = array<i64: 1, 32>}, {pipeline_mode = #tpu.pipeline_mode<synchronous>, transform_indices = @transform_11, window_bounds = array<i64: 1, 32>}, {transform_indices = @transform_12, window_bounds = array<i64: 2, 8, 32>}]} {
    %c0_i32 = arith.constant 0 : i32
    %0 = arith.cmpi eq, %arg1, %c0_i32 : i32
    %1 = arith.extui %0 : i1 to i32
    %c0_i32_0 = arith.constant 0 : i32
    %2 = arith.cmpi ne, %1, %c0_i32_0 : i32
    scf.if %2 {
      %cst_42 = arith.constant 0.000000e+00 : f32
      %70 = vector.broadcast %cst_42 : f32 to vector<16x32xf32>
      %c0_43 = arith.constant 0 : index
      %c0_44 = arith.constant 0 : index
      %71 = vector.load %arg15[%c0_43, %c0_44] : memref<16x32xf32, #tpu.memory_space<vmem>>, vector<16x32xf32>
      tpu.vector_store %arg15[%c0_43, %c0_44], %70 {strides = array<i32>} : memref<16x32xf32, #tpu.memory_space<vmem>>, vector<16x32xf32>,
    } else {
    }
    %c0 = arith.constant 0 : index
    %c0_1 = arith.constant 0 : index
    %c0_2 = arith.constant 0 : index
    %3 = vector.load %arg2[%c0, %c0_1, %c0_2] : memref<2x8x32xf32, #tpu.memory_space<vmem>>, vector<2x8x32xf32>
    %4 = vector.shape_cast %3 : vector<2x8x32xf32> to vector<16x32xf32>
    %5 = arith.truncf %4 : vector<16x32xf32> to vector<16x32xbf16>
    %c0_3 = arith.constant 0 : index
    %c0_4 = arith.constant 0 : index
    %c0_5 = arith.constant 0 : index
    %6 = vector.load %arg4[%c0_3, %c0_4, %c0_5] : memref<1x32x16xf32, #tpu.memory_space<vmem>>, vector<1x32x16xf32>
    %7 = vector.shape_cast %6 : vector<1x32x16xf32> to vector<32x16xf32>
    %8 = arith.truncf %7 : vector<32x16xf32> to vector<32x16xbf16>
    %c0_6 = arith.constant 0 : index
    %c0_7 = arith.constant 0 : index
    %c0_8 = arith.constant 0 : index
    %9 = vector.load %arg6[%c0_6, %c0_7, %c0_8] : memref<1x32x16xf32, #tpu.memory_space<vmem>>, vector<1x32x16xf32>
    %10 = vector.shape_cast %9 : vector<1x32x16xf32> to vector<32x16xf32>
    %11 = arith.truncf %10 : vector<32x16xf32> to vector<32x16xbf16>
    %c0_9 = arith.constant 0 : index
    %c0_10 = arith.constant 0 : index
    %c0_11 = arith.constant 0 : index
    %12 = vector.load %arg8[%c0_9, %c0_10, %c0_11] : memref<1x32x16xf32, #tpu.memory_space<vmem>>, vector<1x32x16xf32>
    %13 = vector.shape_cast %12 : vector<1x32x16xf32> to vector<32x16xf32>
    %14 = arith.truncf %13 : vector<32x16xf32> to vector<32x16xbf16>
    %cst = arith.constant dense<0.000000e+00> : vector<16x16xf32>
    %15 = tpu.matmul %5, %8, %cst {dimension_numbers = #tpu.dot_dimension_numbers<[1], [0], [0], [1], [0, 0, 1, 1], [], []>} : vector<16x32xbf16>, vector<32x16xbf16>, vector<16x16xf32> -> vector<16x16xf32>
    %c0_12 = arith.constant 0 : index
    %c0_13 = arith.constant 0 : index
    %c0_14 = arith.constant 0 : index
    %16 = vector.load %arg5[%c0_12, %c0_13, %c0_14] : memref<1x1x16xf32, #tpu.memory_space<vmem>>, vector<1x1x16xf32>
    %17 = vector.shape_cast %16 : vector<1x1x16xf32> to vector<1x16xf32>
    %18 = vector.broadcast %17 : vector<1x16xf32> to vector<16x16xf32>
    %19 = arith.addf %15, %18 : vector<16x16xf32>
    %cst_15 = arith.constant dense<0.000000e+00> : vector<16x16xf32>
    %20 = tpu.matmul %5, %11, %cst_15 {dimension_numbers = #tpu.dot_dimension_numbers<[1], [0], [0], [1], [0, 0, 1, 1], [], []>} : vector<16x32xbf16>, vector<32x16xbf16>, vector<16x16xf32> -> vector<16x16xf32>
    %c0_16 = arith.constant 0 : index
    %c0_17 = arith.constant 0 : index
    %c0_18 = arith.constant 0 : index
    %21 = vector.load %arg7[%c0_16, %c0_17, %c0_18] : memref<1x1x16xf32, #tpu.memory_space<vmem>>, vector<1x1x16xf32>
    %22 = vector.shape_cast %21 : vector<1x1x16xf32> to vector<1x16xf32>
    %23 = vector.broadcast %22 : vector<1x16xf32> to vector<16x16xf32>
    %24 = arith.addf %20, %23 : vector<16x16xf32>
    %cst_19 = arith.constant dense<0.000000e+00> : vector<16x16xf32>
    %25 = tpu.matmul %5, %14, %cst_19 {dimension_numbers = #tpu.dot_dimension_numbers<[1], [0], [0], [1], [0, 0, 1, 1], [], []>} : vector<16x32xbf16>, vector<32x16xbf16>, vector<16x16xf32> -> vector<16x16xf32>
    %c0_20 = arith.constant 0 : index
    %c0_21 = arith.constant 0 : index
    %c0_22 = arith.constant 0 : index
    %26 = vector.load %arg9[%c0_20, %c0_21, %c0_22] : memref<1x1x16xf32, #tpu.memory_space<vmem>>, vector<1x1x16xf32>
    %27 = vector.shape_cast %26 : vector<1x1x16xf32> to vector<1x16xf32>
    %28 = vector.broadcast %27 : vector<1x16xf32> to vector<16x16xf32>
    %29 = arith.addf %25, %28 : vector<16x16xf32>
    %cst_23 = arith.constant 0.353553385 : f32
    %30 = vector.broadcast %cst_23 : f32 to vector<16x16xf32>
    %31 = arith.mulf %19, %30 : vector<16x16xf32>
    %32 = vector.shape_cast %31 : vector<16x16xf32> to vector<2x8x16xf32>
    %33 = arith.truncf %32 : vector<2x8x16xf32> to vector<2x8x16xbf16>
    %34 = vector.shape_cast %24 : vector<16x16xf32> to vector<2x8x16xf32>
    %35 = arith.truncf %34 : vector<2x8x16xf32> to vector<2x8x16xbf16>
    %36 = vector.shape_cast %29 : vector<16x16xf32> to vector<2x8x16xf32>
    %37 = arith.truncf %36 : vector<2x8x16xf32> to vector<2x8x16xbf16>
    "tpu.trace_start"() <{level = 10 : i32, message = "bqd,bkd->bqk"}> : () -> ()
    %cst_24 = arith.constant dense<0.000000e+00> : vector<2x8x8xf32>
    %38 = tpu.matmul %33, %35, %cst_24 {dimension_numbers = #tpu.dot_dimension_numbers<[2], [2], [1], [1], [0, 0, 0, 1, 1, 1], [0], [0]>} : vector<2x8x16xbf16>, vector<2x8x16xbf16>, vector<2x8x8xf32> -> vector<2x8x8xf32>
    "tpu.trace_stop"() : () -> ()
    %c0_25 = arith.constant 0 : index
    %c0_26 = arith.constant 0 : index
    %c0_27 = arith.constant 0 : index
    %39 = vector.load %arg3[%c0_25, %c0_26, %c0_27] : memref<2x1x8xi32, #tpu.memory_space<vmem>>, vector<2x1x8xi32>
    %c0_i32_28 = arith.constant 0 : i32
    %40 = vector.broadcast %c0_i32_28 : i32 to vector<2x1x8xi32>
    %41 = arith.cmpi eq, %39, %40 : vector<2x1x8xi32>
    %cst_29 = arith.constant -1.000000e+09 : f32
    %42 = vector.shape_cast %41 : vector<2x1x8xi1> to vector<2x1x8xi1>
    %43 = vector.broadcast %42 : vector<2x1x8xi1> to vector<2x8x8xi1>
    %44 = vector.broadcast %cst_29 : f32 to vector<2x8x8xf32>
    %45 = arith.select %43, %44, %38 : vector<2x8x8xi1>, vector<2x8x8xf32>
    %cst_30 = arith.constant dense<0xFF800000> : vector<2x8xf32>
    %46 = vector.multi_reduction <maximumf>, %45, %cst_30 [2] : vector<2x8x8xf32> to vector<2x8xf32>
    %47 = vector.shape_cast %46 : vector<2x8xf32> to vector<2x8x1xf32>
    %48 = vector.broadcast %47 : vector<2x8x1xf32> to vector<2x8x8xf32>
    %49 = arith.subf %45, %48 : vector<2x8x8xf32>
    %50 = math.exp %49 : vector<2x8x8xf32>
    %cst_31 = arith.constant dense<0.000000e+00> : vector<2x8xf32>
    %51 = vector.multi_reduction <add>, %50, %cst_31 [2] : vector<2x8x8xf32> to vector<2x8xf32>
    %52 = vector.shape_cast %51 : vector<2x8xf32> to vector<2x8x1xf32>
    %53 = arith.truncf %50 : vector<2x8x8xf32> to vector<2x8x8xbf16>
    "tpu.trace_start"() <{level = 10 : i32, message = "bqk,bkd->bqd"}> : () -> ()
    %cst_32 = arith.constant dense<0.000000e+00> : vector<2x8x16xf32>
    %54 = tpu.matmul %53, %37, %cst_32 {dimension_numbers = #tpu.dot_dimension_numbers<[2], [1], [1], [2], [0, 0, 0, 1, 1, 2], [0], [0]>} : vector<2x8x8xbf16>, vector<2x8x16xbf16>, vector<2x8x16xf32> -> vector<2x8x16xf32>
    "tpu.trace_stop"() : () -> ()
    %55 = tpu.reciprocal %52 {approx = true} : vector<2x8x1xf32> -> vector<2x8x1xf32>
    %56 = vector.broadcast %55 : vector<2x8x1xf32> to vector<2x8x16xf32>
    %57 = arith.mulf %54, %56 : vector<2x8x16xf32>
    %58 = vector.shape_cast %57 : vector<2x8x16xf32> to vector<16x16xf32>
    %59 = arith.truncf %58 : vector<16x16xf32> to vector<16x16xbf16>
    %c0_33 = arith.constant 0 : index
    %c0_34 = arith.constant 0 : index
    %c0_35 = arith.constant 0 : index
    %60 = vector.load %arg10[%c0_33, %c0_34, %c0_35] : memref<1x16x32xf32, #tpu.memory_space<vmem>>, vector<1x16x32xf32>
    %61 = vector.shape_cast %60 : vector<1x16x32xf32> to vector<16x32xf32>
    %62 = arith.truncf %61 : vector<16x32xf32> to vector<16x32xbf16>
    %c0_36 = arith.constant 0 : index
    %c0_37 = arith.constant 0 : index
    %63 = vector.load %arg15[%c0_36, %c0_37] : memref<16x32xf32, #tpu.memory_space<vmem>>, vector<16x32xf32>
    %cst_38 = arith.constant dense<0.000000e+00> : vector<16x32xf32>
    %64 = tpu.matmul %59, %62, %cst_38 {dimension_numbers = #tpu.dot_dimension_numbers<[1], [0], [0], [1], [0, 0, 1, 1], [], []>} : vector<16x16xbf16>, vector<16x32xbf16>, vector<16x32xf32> -> vector<16x32xf32>
    %65 = arith.addf %63, %64 : vector<16x32xf32>
    %c0_39 = arith.constant 0 : index
    %c0_40 = arith.constant 0 : index
    %66 = vector.load %arg15[%c0_39, %c0_40] : memref<16x32xf32, #tpu.memory_space<vmem>>, vector<16x32xf32>
    tpu.vector_store %arg15[%c0_39, %c0_40], %65 {strides = array<i32>} : memref<16x32xf32, #tpu.memory_space<vmem>>, vector<16x32xf32>,
    %c3_i32 = arith.constant 3 : i32
    %67 = arith.cmpi eq, %arg1, %c3_i32 : i32
    %68 = arith.extui %67 : i1 to i32
    %c0_i32_41 = arith.constant 0 : i32
    %69 = arith.cmpi ne, %68, %c0_i32_41 : i32
    scf.if %69 {
      %c0_42 = arith.constant 0 : index
      %c0_43 = arith.constant 0 : index
      %70 = vector.load %arg15[%c0_42, %c0_43] : memref<16x32xf32, #tpu.memory_space<vmem>>, vector<16x32xf32>
      %c0_44 = arith.constant 0 : index
      %c0_45 = arith.constant 0 : index
      %71 = vector.load %arg11[%c0_44, %c0_45] : memref<1x32xf32, #tpu.memory_space<vmem>>, vector<1x32xf32>
      %72 = vector.broadcast %71 : vector<1x32xf32> to vector<16x32xf32>
      %73 = arith.addf %70, %72 : vector<16x32xf32>
      %cst_46 = arith.constant dense<0.000000e+00> : vector<16xf32>
      %74 = vector.multi_reduction <add>, %73, %cst_46 [1] : vector<16x32xf32> to vector<16xf32>
      %75 = vector.shape_cast %74 : vector<16xf32> to vector<16x1xf32>
      %cst_47 = arith.constant 3.200000e+01 : f32
      %76 = vector.broadcast %cst_47 : f32 to vector<16x1xf32>
      %77 = arith.divf %75, %76 : vector<16x1xf32>
      %78 = vector.broadcast %77 : vector<16x1xf32> to vector<16x32xf32>
      %79 = arith.subf %73, %78 : vector<16x32xf32>
      %80 = arith.mulf %79, %79 : vector<16x32xf32>
      %cst_48 = arith.constant dense<0.000000e+00> : vector<16xf32>
      %81 = vector.multi_reduction <add>, %80, %cst_48 [1] : vector<16x32xf32> to vector<16xf32>
      %82 = vector.shape_cast %81 : vector<16xf32> to vector<16x1xf32>
      %cst_49 = arith.constant 3.200000e+01 : f32
      %83 = vector.broadcast %cst_49 : f32 to vector<16x1xf32>
      %84 = arith.divf %82, %83 : vector<16x1xf32>
      %85 = vector.broadcast %77 : vector<16x1xf32> to vector<16x32xf32>
      %86 = arith.subf %73, %85 : vector<16x32xf32>
      %cst_50 = arith.constant 9.99999974E-6 : f32
      %87 = vector.broadcast %cst_50 : f32 to vector<16x1xf32>
      %88 = arith.addf %84, %87 : vector<16x1xf32>
      %89 = math.rsqrt %88 : vector<16x1xf32>
      %90 = vector.broadcast %89 : vector<16x1xf32> to vector<16x32xf32>
      %91 = arith.mulf %86, %90 : vector<16x32xf32>
      %c0_51 = arith.constant 0 : index
      %c0_52 = arith.constant 0 : index
      %92 = vector.load %arg12[%c0_51, %c0_52] : memref<1x32xf32, #tpu.memory_space<vmem>>, vector<1x32xf32>
      %93 = vector.broadcast %92 : vector<1x32xf32> to vector<16x32xf32>
      %94 = arith.mulf %91, %93 : vector<16x32xf32>
      %c0_53 = arith.constant 0 : index
      %c0_54 = arith.constant 0 : index
      %95 = vector.load %arg13[%c0_53, %c0_54] : memref<1x32xf32, #tpu.memory_space<vmem>>, vector<1x32xf32>
      %96 = vector.broadcast %95 : vector<1x32xf32> to vector<16x32xf32>
      %97 = arith.addf %94, %96 : vector<16x32xf32>
      %98 = vector.shape_cast %97 : vector<16x32xf32> to vector<2x8x32xf32>
      %c0_55 = arith.constant 0 : index
      %c0_56 = arith.constant 0 : index
      %c0_57 = arith.constant 0 : index
      %99 = vector.load %arg14[%c0_55, %c0_56, %c0_57] : memref<2x8x32xf32, #tpu.memory_space<vmem>>, vector<2x8x32xf32>
      tpu.vector_store %arg14[%c0_55, %c0_56, %c0_57], %98 {strides = array<i32>} : memref<2x8x32xf32, #tpu.memory_space<vmem>>, vector<2x8x32xf32>,
    } else {
    }
    return
  }
  func.func @transform_0(%arg0: i32, %arg1: i32) -> (i32, i32, i32) {
    %c0_i32 = arith.constant 0 : i32
    %c0_i32_0 = arith.constant 0 : i32
    %c0_i32_1 = arith.constant 0 : i32
    return %arg0, %c0_i32, %c0_i32_0 : i32, i32, i32
  }
  func.func @transform_1(%arg0: i32, %arg1: i32) -> (i32, i32, i32) {
    %c0_i32 = arith.constant 0 : i32
    %c0_i32_0 = arith.constant 0 : i32
    %c0_i32_1 = arith.constant 0 : i32
    return %arg0, %c0_i32, %c0_i32_0 : i32, i32, i32
  }
  func.func @transform_2(%arg0: i32, %arg1: i32) -> (i32, i32, i32) {
    %c0_i32 = arith.constant 0 : i32
    %c0_i32_0 = arith.constant 0 : i32
    %c0_i32_1 = arith.constant 0 : i32
    return %arg1, %c0_i32, %c0_i32_0 : i32, i32, i32
  }
  func.func @transform_3(%arg0: i32, %arg1: i32) -> (i32, i32, i32) {
    %c0_i32 = arith.constant 0 : i32
    %c0_i32_0 = arith.constant 0 : i32
    %c0_i32_1 = arith.constant 0 : i32
    return %arg1, %c0_i32, %c0_i32_0 : i32, i32, i32
  }
  func.func @transform_4(%arg0: i32, %arg1: i32) -> (i32, i32, i32) {
    %c0_i32 = arith.constant 0 : i32
    %c0_i32_0 = arith.constant 0 : i32
    %c0_i32_1 = arith.constant 0 : i32
    return %arg1, %c0_i32, %c0_i32_0 : i32, i32, i32
  }
  func.func @transform_5(%arg0: i32, %arg1: i32) -> (i32, i32, i32) {
    %c0_i32 = arith.constant 0 : i32
    %c0_i32_0 = arith.constant 0 : i32
    %c0_i32_1 = arith.constant 0 : i32
    return %arg1, %c0_i32, %c0_i32_0 : i32, i32, i32
  }
  func.func @transform_6(%arg0: i32, %arg1: i32) -> (i32, i32, i32) {
    %c0_i32 = arith.constant 0 : i32
    %c0_i32_0 = arith.constant 0 : i32
    %c0_i32_1 = arith.constant 0 : i32
    return %arg1, %c0_i32, %c0_i32_0 : i32, i32, i32
  }
  func.func @transform_7(%arg0: i32, %arg1: i32) -> (i32, i32, i32) {
    %c0_i32 = arith.constant 0 : i32
    %c0_i32_0 = arith.constant 0 : i32
    %c0_i32_1 = arith.constant 0 : i32
    return %arg1, %c0_i32, %c0_i32_0 : i32, i32, i32
  }
  func.func @transform_8(%arg0: i32, %arg1: i32) -> (i32, i32, i32) {
    %c0_i32 = arith.constant 0 : i32
    %c0_i32_0 = arith.constant 0 : i32
    %c0_i32_1 = arith.constant 0 : i32
    return %arg1, %c0_i32, %c0_i32_0 : i32, i32, i32
  }
  func.func @transform_9(%arg0: i32, %arg1: i32) -> (i32, i32) {
    %c0_i32 = arith.constant 0 : i32
    %c0_i32_0 = arith.constant 0 : i32
    %c0_i32_1 = arith.constant 0 : i32
    return %c0_i32, %c0_i32_0 : i32, i32
  }
  func.func @transform_10(%arg0: i32, %arg1: i32) -> (i32, i32) {
    %c0_i32 = arith.constant 0 : i32
    %c0_i32_0 = arith.constant 0 : i32
    %c0_i32_1 = arith.constant 0 : i32
    return %c0_i32, %c0_i32_0 : i32, i32
  }
  func.func @transform_11(%arg0: i32, %arg1: i32) -> (i32, i32) {
    %c0_i32 = arith.constant 0 : i32
    %c0_i32_0 = arith.constant 0 : i32
    %c0_i32_1 = arith.constant 0 : i32
    return %c0_i32, %c0_i32_0 : i32, i32
  }
  func.func @transform_12(%arg0: i32, %arg1: i32) -> (i32, i32, i32) {
    %c0_i32 = arith.constant 0 : i32
    %c0_i32_0 = arith.constant 0 : i32
    %c0_i32_1 = arith.constant 0 : i32
    return %arg0, %c0_i32, %c0_i32_0 : i32, i32, i32
  }
}

</mosaic_0001>

<llo_original>
// kernel: tpu_custom_call.1
$region0: #{tpu_custom_call.1}
  #allocation0 [shape = 'u32[]', space=smem, size = 0x4, offset = 0x4, fixed_abs, tag = 'smem constant byte address 0x4 - core index']
  #allocation1 [shape = 'u32[72,128]{1,0:T(1,128)}', space=vmem, size = 0x9000, scoped, tag = 'internal scratch']
  #allocation2 [shape = 'f32[16,32]{1,0:T(8,128)}', space=vmem, size = 0x2000, scoped, tag = 'scratch operand']
  %s0 = inlined_call_operand.vmem [shape: f32[2,8,32], index: 0, kind: input, shape index: {}]
  %s1 = inlined_call_operand.vmem [shape: s32[2,1,8], index: 1, kind: input, shape index: {}]
  %s2 = inlined_call_operand.vmem [shape: f32[4,32,16], index: 2, kind: input, shape index: {}]
  %s3 = inlined_call_operand.vmem [shape: f32[4,1,16], index: 3, kind: input, shape index: {}]
  %s4 = inlined_call_operand.vmem [shape: f32[4,32,16], index: 4, kind: input, shape index: {}]
  %s5 = inlined_call_operand.vmem [shape: f32[4,1,16], index: 5, kind: input, shape index: {}]
  %s6 = inlined_call_operand.vmem [shape: f32[4,32,16], index: 6, kind: input, shape index: {}]
  %s7 = inlined_call_operand.vmem [shape: f32[4,1,16], index: 7, kind: input, shape index: {}]
  %s8 = inlined_call_operand.vmem [shape: f32[4,16,32], index: 8, kind: input, shape index: {}]
  %s9 = inlined_call_operand.vmem [shape: f32[1,32], index: 9, kind: input, shape index: {}]
  %s10 = inlined_call_operand.vmem [shape: f32[1,32], index: 10, kind: input, shape index: {}]
  %s11 = inlined_call_operand.vmem [shape: f32[1,32], index: 11, kind: input, shape index: {}]
  %s12 = inlined_call_operand.hbm [shape: f32[2,8,32], index: 12, kind: output, shape index: {}]
  %s13 = sld [smem:[#allocation0]]
  $region89: #{tpu_custom_call.1} parent=0
    _
  %s15 = ssub.s32 1, %s13
  %s16 = scalar_select 0, %s15, %s13
  $region1: #{tpu_custom_call.1} parent=0
    #allocation3 [shape = 'u8[8192]{0}', space=vmem, size = 0x2000, scoped, tag = 'output window, operand 0, single buffered']
    #allocation4 [shape = 's32[2]{0}', space=sflag, size = 0x8, scoped, tag = 'scoped memory for tpu_custom_call.1']
    %17 = vsyncpa [#allocation4], 0
    loop: start=0, step=1, limit=6
    $region2: #{tpu_custom_call.1} parent=1 // loop_pre_header
      _
    $region3: #{tpu_custom_call.1} parent=1 // loop_header
      %s19 = sphi 0, %s23
      %p20 = scmp.ge.s32.totalorder %s19, 6
      %s26 = sphi 0, %s38
      %s27 = sphi 0, %s34
      %s28 = sphi 0, %s26
      %s29 = sphi 0, %s27
      %s30 = sphi 0, %s28
      %s31 = sphi 0, %s29
      %s41 = sphi 0, %s43
      %s44 = sphi 0, %s41
      %s45 = sphi 0, %s44
      %s61 = sphi 0, %s45
      %s67 = sphi 0, %s69
      %s70 = sphi 0, %s67
      %s71 = sphi 0, %s70
      %s87 = sphi 0, %s71
      %s93 = sphi 0, %s95
      %s96 = sphi 0, %s93
      %s97 = sphi 0, %s96
      %s113 = sphi 0, %s97
      %s119 = sphi 0, %s121
      %s122 = sphi 0, %s119
      %s123 = sphi 0, %s122
      %s139 = sphi 0, %s123
      %s145 = sphi 0, %s147
      %s148 = sphi 0, %s145
      %s149 = sphi 0, %s148
      %s165 = sphi 0, %s149
      %s171 = sphi 0, %s173
      %s174 = sphi 0, %s171
      %s175 = sphi 0, %s174
      %s191 = sphi 0, %s175
      %s197 = sphi 0, %s199
      %s200 = sphi 0, %s197
      %s201 = sphi 0, %s200
      %s217 = sphi 0, %s201
      %s223 = sphi 0, %s225
      %s226 = sphi 0, %s223
      %s227 = sphi 0, %s226
      %s243 = sphi 0, %s227
      %s249 = sphi 0, %s251
      %s252 = sphi 0, %s249
      %s253 = sphi 0, %s252
      %s269 = sphi 0, %s253
      %s273 = sphi 0, %s273
      %s275 = sphi 0, %s273
      %s276 = sphi 0, %s275
      %s290 = sphi 0, %s276
      %s294 = sphi 0, %s294
      %s296 = sphi 0, %s294
      %s297 = sphi 0, %s296
      %s311 = sphi 0, %s297
      %s315 = sphi 0, %s315
      %s317 = sphi 0, %s315
      %s318 = sphi 0, %s317
      %s332 = sphi 0, %s318
      %s338 = sphi 0, %s340
      %s341 = sphi 0, %s338
      %s342 = sphi 0, %s341
      %s358 = sphi 0, %s342
    $region4: #{tpu_custom_call.1} parent=1 // loop_header_branch
      %22 = sbr.rel (%p20) target = $region8
    $region5: #{tpu_custom_call.1} parent=1 // loop_body
      %s24 = ssub.s32 %s19, 1
      %s25 = ssub.s32 %s19, 2
      %s32 = sadd.s32 1, %s27
      %p33 = scmp.ge.s32.totalorder %s32, 4
      %s34 = scalar_select %p33, 0, %s32
      %s35 = sadd.s32 1, %s26
      %s36 = scalar_select %p33, %s35, %s26
      %p37 = scmp.ge.s32.totalorder %s36, 1
      %s38 = scalar_select %p37, 0, %s36
      %s39 = ssub.s32 %s26, %s38
      %p40 = scmp.eq.s32.totalorder %s39, 0
      %s42 = sadd.s32 %s41, 1
      %s43 = scalar_select %p40, %s41, %s42
      %p46 = pneg %p40
      %p47 = scmp.eq.s32.totalorder %s19, 3
      %p48 = por %p46, %p47
      %p49 = scmp.ne.s32.totalorder %s41, %s44
      %p50 = scmp.eq.s32.totalorder %s19, 0
      %p51 = por %p49, %p50
      %p52 = scmp.ne.s32.totalorder %s41, %s44
      %p53 = scmp.eq.s32.totalorder %s24, 3
      %p54 = por %p52, %p53
      %p55 = scmp.ne.s32.totalorder %s44, %s45
      %p56 = scmp.eq.s32.totalorder %s24, 0
      %p57 = por %p55, %p56
      %p58 = scmp.ne.s32.totalorder %s44, %s45
      %p59 = scmp.eq.s32.totalorder %s25, 3
      %p60 = por %p58, %p59
      %p62 = scmp.ne.s32.totalorder %s45, %s61
      %p63 = scmp.eq.s32.totalorder %s25, 0
      %p64 = por %p62, %p63
      %s65 = ssub.s32 %s26, %s38
      %p66 = scmp.eq.s32.totalorder %s65, 0
      %s68 = sadd.s32 %s67, 1
      %s69 = scalar_select %p66, %s67, %s68
      %p72 = pneg %p66
      %p73 = scmp.eq.s32.totalorder %s19, 3
      %p74 = por %p72, %p73
      %p75 = scmp.ne.s32.totalorder %s67, %s70
      %p76 = scmp.eq.s32.totalorder %s19, 0
      %p77 = por %p75, %p76
      %p78 = scmp.ne.s32.totalorder %s67, %s70
      %p79 = scmp.eq.s32.totalorder %s24, 3
      %p80 = por %p78, %p79
      %p81 = scmp.ne.s32.totalorder %s70, %s71
      %p82 = scmp.eq.s32.totalorder %s24, 0
      %p83 = por %p81, %p82
      %p84 = scmp.ne.s32.totalorder %s70, %s71
      %p85 = scmp.eq.s32.totalorder %s25, 3
      %p86 = por %p84, %p85
      %p88 = scmp.ne.s32.totalorder %s71, %s87
      %p89 = scmp.eq.s32.totalorder %s25, 0
      %p90 = por %p88, %p89
      %s91 = ssub.s32 %s27, %s34
      %p92 = scmp.eq.s32.totalorder %s91, 0
      %s94 = sadd.s32 %s93, 1
      %s95 = scalar_select %p92, %s93, %s94
      %p98 = pneg %p92
      %p99 = scmp.eq.s32.totalorder %s19, 3
      %p100 = por %p98, %p99
      %p101 = scmp.ne.s32.totalorder %s93, %s96
      %p102 = scmp.eq.s32.totalorder %s19, 0
      %p103 = por %p101, %p102
      %p104 = scmp.ne.s32.totalorder %s93, %s96
      %p105 = scmp.eq.s32.totalorder %s24, 3
      %p106 = por %p104, %p105
      %p107 = scmp.ne.s32.totalorder %s96, %s97
      %p108 = scmp.eq.s32.totalorder %s24, 0
      %p109 = por %p107, %p108
      %p110 = scmp.ne.s32.totalorder %s96, %s97
      %p111 = scmp.eq.s32.totalorder %s25, 3
      %p112 = por %p110, %p111
      %p114 = scmp.ne.s32.totalorder %s97, %s113
      %p115 = scmp.eq.s32.totalorder %s25, 0
      %p116 = por %p114, %p115
      %s117 = ssub.s32 %s27, %s34
      %p118 = scmp.eq.s32.totalorder %s117, 0
      %s120 = sadd.s32 %s119, 1
      %s121 = scalar_select %p118, %s119, %s120
      %p124 = pneg %p118
      %p125 = scmp.eq.s32.totalorder %s19, 3
      %p126 = por %p124, %p125
      %p127 = scmp.ne.s32.totalorder %s119, %s122
      %p128 = scmp.eq.s32.totalorder %s19, 0
      %p129 = por %p127, %p128
      %p130 = scmp.ne.s32.totalorder %s119, %s122
      %p131 = scmp.eq.s32.totalorder %s24, 3
      %p132 = por %p130, %p131
      %p133 = scmp.ne.s32.totalorder %s122, %s123
      %p134 = scmp.eq.s32.totalorder %s24, 0
      %p135 = por %p133, %p134
      %p136 = scmp.ne.s32.totalorder %s122, %s123
      %p137 = scmp.eq.s32.totalorder %s25, 3
      %p138 = por %p136, %p137
      %p140 = scmp.ne.s32.totalorder %s123, %s139
      %p141 = scmp.eq.s32.totalorder %s25, 0
      %p142 = por %p140, %p141
      %s143 = ssub.s32 %s27, %s34
      %p144 = scmp.eq.s32.totalorder %s143, 0
      %s146 = sadd.s32 %s145, 1
      %s147 = scalar_select %p144, %s145, %s146
      %p150 = pneg %p144
      %p151 = scmp.eq.s32.totalorder %s19, 3
      %p152 = por %p150, %p151
      %p153 = scmp.ne.s32.totalorder %s145, %s148
      %p154 = scmp.eq.s32.totalorder %s19, 0
      %p155 = por %p153, %p154
      %p156 = scmp.ne.s32.totalorder %s145, %s148
      %p157 = scmp.eq.s32.totalorder %s24, 3
      %p158 = por %p156, %p157
      %p159 = scmp.ne.s32.totalorder %s148, %s149
      %p160 = scmp.eq.s32.totalorder %s24, 0
      %p161 = por %p159, %p160
      %p162 = scmp.ne.s32.totalorder %s148, %s149
      %p163 = scmp.eq.s32.totalorder %s25, 3
      %p164 = por %p162, %p163
      %p166 = scmp.ne.s32.totalorder %s149, %s165
      %p167 = scmp.eq.s32.totalorder %s25, 0
      %p168 = por %p166, %p167
      %s169 = ssub.s32 %s27, %s34
      %p170 = scmp.eq.s32.totalorder %s169, 0
      %s172 = sadd.s32 %s171, 1
      %s173 = scalar_select %p170, %s171, %s172
      %p176 = pneg %p170
      %p177 = scmp.eq.s32.totalorder %s19, 3
      %p178 = por %p176, %p177
      %p179 = scmp.ne.s32.totalorder %s171, %s174
      %p180 = scmp.eq.s32.totalorder %s19, 0
      %p181 = por %p179, %p180
      %p182 = scmp.ne.s32.totalorder %s171, %s174
      %p183 = scmp.eq.s32.totalorder %s24, 3
      %p184 = por %p182, %p183
      %p185 = scmp.ne.s32.totalorder %s174, %s175
      %p186 = scmp.eq.s32.totalorder %s24, 0
      %p187 = por %p185, %p186
      %p188 = scmp.ne.s32.totalorder %s174, %s175
      %p189 = scmp.eq.s32.totalorder %s25, 3
      %p190 = por %p188, %p189
      %p192 = scmp.ne.s32.totalorder %s175, %s191
      %p193 = scmp.eq.s32.totalorder %s25, 0
      %p194 = por %p192, %p193
      %s195 = ssub.s32 %s27, %s34
      %p196 = scmp.eq.s32.totalorder %s195, 0
      %s198 = sadd.s32 %s197, 1
      %s199 = scalar_select %p196, %s197, %s198
      %p202 = pneg %p196
      %p203 = scmp.eq.s32.totalorder %s19, 3
      %p204 = por %p202, %p203
      %p205 = scmp.ne.s32.totalorder %s197, %s200
      %p206 = scmp.eq.s32.totalorder %s19, 0
      %p207 = por %p205, %p206
      %p208 = scmp.ne.s32.totalorder %s197, %s200
      %p209 = scmp.eq.s32.totalorder %s24, 3
      %p210 = por %p208, %p209
      %p211 = scmp.ne.s32.totalorder %s200, %s201
      %p212 = scmp.eq.s32.totalorder %s24, 0
      %p213 = por %p211, %p212
      %p214 = scmp.ne.s32.totalorder %s200, %s201
      %p215 = scmp.eq.s32.totalorder %s25, 3
      %p216 = por %p214, %p215
      %p218 = scmp.ne.s32.totalorder %s201, %s217
      %p219 = scmp.eq.s32.totalorder %s25, 0
      %p220 = por %p218, %p219
      %s221 = ssub.s32 %s27, %s34
      %p222 = scmp.eq.s32.totalorder %s221, 0
      %s224 = sadd.s32 %s223, 1
      %s225 = scalar_select %p222, %s223, %s224
      %p228 = pneg %p222
      %p229 = scmp.eq.s32.totalorder %s19, 3
      %p230 = por %p228, %p229
      %p231 = scmp.ne.s32.totalorder %s223, %s226
      %p232 = scmp.eq.s32.totalorder %s19, 0
      %p233 = por %p231, %p232
      %p234 = scmp.ne.s32.totalorder %s223, %s226
      %p235 = scmp.eq.s32.totalorder %s24, 3
      %p236 = por %p234, %p235
      %p237 = scmp.ne.s32.totalorder %s226, %s227
      %p238 = scmp.eq.s32.totalorder %s24, 0
      %p239 = por %p237, %p238
      %p240 = scmp.ne.s32.totalorder %s226, %s227
      %p241 = scmp.eq.s32.totalorder %s25, 3
      %p242 = por %p240, %p241
      %p244 = scmp.ne.s32.totalorder %s227, %s243
      %p245 = scmp.eq.s32.totalorder %s25, 0
      %p246 = por %p244, %p245
      %s247 = ssub.s32 %s27, %s34
      %p248 = scmp.eq.s32.totalorder %s247, 0
      %s250 = sadd.s32 %s249, 1
      %s251 = scalar_select %p248, %s249, %s250
      %p254 = pneg %p248
      %p255 = scmp.eq.s32.totalorder %s19, 3
      %p256 = por %p254, %p255
      %p257 = scmp.ne.s32.totalorder %s249, %s252
      %p258 = scmp.eq.s32.totalorder %s19, 0
      %p259 = por %p257, %p258
      %p260 = scmp.ne.s32.totalorder %s249, %s252
      %p261 = scmp.eq.s32.totalorder %s24, 3
      %p262 = por %p260, %p261
      %p263 = scmp.ne.s32.totalorder %s252, %s253
      %p264 = scmp.eq.s32.totalorder %s24, 0
      %p265 = por %p263, %p264
      %p266 = scmp.ne.s32.totalorder %s252, %s253
      %p267 = scmp.eq.s32.totalorder %s25, 3
      %p268 = por %p266, %p267
      %p270 = scmp.ne.s32.totalorder %s253, %s269
      %p271 = scmp.eq.s32.totalorder %s25, 0
      %p272 = por %p270, %p271
      %s274 = sadd.s32 %s273, 1
      %p277 = scmp.eq.s32.totalorder %s19, 3
      %p278 = scmp.ne.s32.totalorder %s273, %s275
      %p279 = scmp.eq.s32.totalorder %s19, 0
      %p280 = por %p278, %p279
      %p281 = scmp.ne.s32.totalorder %s273, %s275
      %p282 = scmp.eq.s32.totalorder %s24, 3
      %p283 = por %p281, %p282
      %p284 = scmp.ne.s32.totalorder %s275, %s276
      %p285 = scmp.eq.s32.totalorder %s24, 0
      %p286 = por %p284, %p285
      %p287 = scmp.ne.s32.totalorder %s275, %s276
      %p288 = scmp.eq.s32.totalorder %s25, 3
      %p289 = por %p287, %p288
      %p291 = scmp.ne.s32.totalorder %s276, %s290
      %p292 = scmp.eq.s32.totalorder %s25, 0
      %p293 = por %p291, %p292
      %s295 = sadd.s32 %s294, 1
      %p298 = scmp.eq.s32.totalorder %s19, 3
      %p299 = scmp.ne.s32.totalorder %s294, %s296
      %p300 = scmp.eq.s32.totalorder %s19, 0
      %p301 = por %p299, %p300
      %p302 = scmp.ne.s32.totalorder %s294, %s296
      %p303 = scmp.eq.s32.totalorder %s24, 3
      %p304 = por %p302, %p303
      %p305 = scmp.ne.s32.totalorder %s296, %s297
      %p306 = scmp.eq.s32.totalorder %s24, 0
      %p307 = por %p305, %p306
      %p308 = scmp.ne.s32.totalorder %s296, %s297
      %p309 = scmp.eq.s32.totalorder %s25, 3
      %p310 = por %p308, %p309
      %p312 = scmp.ne.s32.totalorder %s297, %s311
      %p313 = scmp.eq.s32.totalorder %s25, 0
      %p314 = por %p312, %p313
      %s316 = sadd.s32 %s315, 1
      %p319 = scmp.eq.s32.totalorder %s19, 3
      %p320 = scmp.ne.s32.totalorder %s315, %s317
      %p321 = scmp.eq.s32.totalorder %s19, 0
      %p322 = por %p320, %p321
      %p323 = scmp.ne.s32.totalorder %s315, %s317
      %p324 = scmp.eq.s32.totalorder %s24, 3
      %p325 = por %p323, %p324
      %p326 = scmp.ne.s32.totalorder %s317, %s318
      %p327 = scmp.eq.s32.totalorder %s24, 0
      %p328 = por %p326, %p327
      %p329 = scmp.ne.s32.totalorder %s317, %s318
      %p330 = scmp.eq.s32.totalorder %s25, 3
      %p331 = por %p329, %p330
      %p333 = scmp.ne.s32.totalorder %s318, %s332
      %p334 = scmp.eq.s32.totalorder %s25, 0
      %p335 = por %p333, %p334
      %s336 = ssub.s32 %s26, %s38
      %p337 = scmp.eq.s32.totalorder %s336, 0
      %s339 = sadd.s32 %s338, 1
      %s340 = scalar_select %p337, %s338, %s339
      %p343 = pneg %p337
      %p344 = scmp.eq.s32.totalorder %s19, 3
      %p345 = por %p343, %p344
      %p346 = scmp.ne.s32.totalorder %s338, %s341
      %p347 = scmp.eq.s32.totalorder %s19, 0
      %p348 = por %p346, %p347
      %p349 = scmp.ne.s32.totalorder %s338, %s341
      %p350 = scmp.eq.s32.totalorder %s24, 3
      %p351 = por %p349, %p350
      %p352 = scmp.ne.s32.totalorder %s341, %s342
      %p353 = scmp.eq.s32.totalorder %s24, 0
      %p354 = por %p352, %p353
      %p355 = scmp.ne.s32.totalorder %s341, %s342
      %p356 = scmp.eq.s32.totalorder %s25, 3
      %p357 = por %p355, %p356
      %p359 = scmp.ne.s32.totalorder %s342, %s358
      %p360 = scmp.eq.s32.totalorder %s25, 0
      %p361 = por %p359, %p360
      %p362 = scmp.le.s32.totalorder 1, %s19
      %p363 = scmp.lt.s32.totalorder %s19, 5
      %p364 = pnand %p362, %p363
      %p365 = pneg %p364
      // Predicated region
      $region9: #{tpu_custom_call.1} parent=5 // pred_check
        _
      $region10: #{tpu_custom_call.1} parent=5 // pred_check_branch
        %367 = sbr.rel (%p364) target = $region12
      $region11: #{tpu_custom_call.1} parent=5 // pred_region
        %s368 = ssub.s32 %s19, 1
        // Predicated region
        $region13: #{tpu_custom_call.1} parent=11 // pred_check
          %p369 = pneg %p57
        $region14: #{tpu_custom_call.1} parent=11 // pred_check_branch
          %371 = sbr.rel (%p369) target = $region16
        $region15: #{tpu_custom_call.1} parent=11 // pred_region
          %s372 = smul.u32 2, %s28
          %p373 = scmp.lt.s32.totalorder %s372, 1
          %s374 = scalar_select %p373, %s372, 1
          %s375 = smul.addr %s374, 8
          %s376 = scalar_lea.vmem %s0, %s375
          %s377 = smul.u32 2, %s28
        $region16: #{tpu_custom_call.1} parent=11 // pred_fallthru
          _
        // Predicated region
        $region17: #{tpu_custom_call.1} parent=11 // pred_check
          %p378 = pneg %p83
        $region18: #{tpu_custom_call.1} parent=11 // pred_check_branch
          %380 = sbr.rel (%p378) target = $region20
        $region19: #{tpu_custom_call.1} parent=11 // pred_region
          %s381 = smul.u32 2, %s28
          %p382 = scmp.lt.s32.totalorder %s381, 1
          %s383 = scalar_select %p382, %s381, 1
          %s384 = scalar_lea.vmem %s1, %s383
          %s385 = smul.u32 2, %s28
        $region20: #{tpu_custom_call.1} parent=11 // pred_fallthru
          _
        // Predicated region
        $region21: #{tpu_custom_call.1} parent=11 // pred_check
          %p386 = pneg %p286
        $region22: #{tpu_custom_call.1} parent=11 // pred_check_branch
          %388 = sbr.rel (%p386) target = $region24
        $region23: #{tpu_custom_call.1} parent=11 // pred_region
          _
        $region24: #{tpu_custom_call.1} parent=11 // pred_fallthru
          _
        // Predicated region
        $region25: #{tpu_custom_call.1} parent=11 // pred_check
          %p389 = pneg %p307
        $region26: #{tpu_custom_call.1} parent=11 // pred_check_branch
          %391 = sbr.rel (%p389) target = $region28
        $region27: #{tpu_custom_call.1} parent=11 // pred_region
          _
        $region28: #{tpu_custom_call.1} parent=11 // pred_fallthru
          _
        // Predicated region
        $region29: #{tpu_custom_call.1} parent=11 // pred_check
          %p392 = pneg %p328
        $region30: #{tpu_custom_call.1} parent=11 // pred_check_branch
          %394 = sbr.rel (%p392) target = $region32
        $region31: #{tpu_custom_call.1} parent=11 // pred_region
          _
        $region32: #{tpu_custom_call.1} parent=11 // pred_fallthru
          _
      $region12: #{tpu_custom_call.1} parent=5 // pred_fallthru
        _
      %p395 = scmp.lt.s32.totalorder %s19, 4
      // Predicated region
      $region33: #{tpu_custom_call.1} parent=5 // pred_check
        %p396 = pneg %p395
      $region34: #{tpu_custom_call.1} parent=5 // pred_check_branch
        %398 = sbr.rel (%p396) target = $region36
      $region35: #{tpu_custom_call.1} parent=5 // pred_region
        // Predicated region
        $region37: #{tpu_custom_call.1} parent=35 // pred_check
          %p399 = pneg %p103
        $region38: #{tpu_custom_call.1} parent=35 // pred_check_branch
          %401 = sbr.rel (%p399) target = $region40
        $region39: #{tpu_custom_call.1} parent=35 // pred_region
          %p402 = scmp.lt.s32.totalorder %s27, 3
          %s403 = scalar_select %p402, %s27, 3
          %s404 = smul.addr %s403, 4
          %s405 = smul.addr %s404, 8
          %s406 = scalar_lea.vmem %s2, %s405
        $region40: #{tpu_custom_call.1} parent=35 // pred_fallthru
          _
        // Predicated region
        $region41: #{tpu_custom_call.1} parent=35 // pred_check
          %p407 = pneg %p129
        $region42: #{tpu_custom_call.1} parent=35 // pred_check_branch
          %409 = sbr.rel (%p407) target = $region44
        $region43: #{tpu_custom_call.1} parent=35 // pred_region
          %p410 = scmp.lt.s32.totalorder %s27, 3
          %s411 = scalar_select %p410, %s27, 3
          %s412 = scalar_lea.vmem %s3, %s411
        $region44: #{tpu_custom_call.1} parent=35 // pred_fallthru
          _
        // Predicated region
        $region45: #{tpu_custom_call.1} parent=35 // pred_check
          %p413 = pneg %p155
        $region46: #{tpu_custom_call.1} parent=35 // pred_check_branch
          %415 = sbr.rel (%p413) target = $region48
        $region47: #{tpu_custom_call.1} parent=35 // pred_region
          %p416 = scmp.lt.s32.totalorder %s27, 3
          %s417 = scalar_select %p416, %s27, 3
          %s418 = smul.addr %s417, 4
          %s419 = smul.addr %s418, 8
          %s420 = scalar_lea.vmem %s4, %s419
        $region48: #{tpu_custom_call.1} parent=35 // pred_fallthru
          _
        // Predicated region
        $region49: #{tpu_custom_call.1} parent=35 // pred_check
          %p421 = pneg %p181
        $region50: #{tpu_custom_call.1} parent=35 // pred_check_branch
          %423 = sbr.rel (%p421) target = $region52
        $region51: #{tpu_custom_call.1} parent=35 // pred_region
          %p424 = scmp.lt.s32.totalorder %s27, 3
          %s425 = scalar_select %p424, %s27, 3
          %s426 = scalar_lea.vmem %s5, %s425
        $region52: #{tpu_custom_call.1} parent=35 // pred_fallthru
          _
        // Predicated region
        $region53: #{tpu_custom_call.1} parent=35 // pred_check
          %p427 = pneg %p207
        $region54: #{tpu_custom_call.1} parent=35 // pred_check_branch
          %429 = sbr.rel (%p427) target = $region56
        $region55: #{tpu_custom_call.1} parent=35 // pred_region
          %p430 = scmp.lt.s32.totalorder %s27, 3
          %s431 = scalar_select %p430, %s27, 3
          %s432 = smul.addr %s431, 4
          %s433 = smul.addr %s432, 8
          %s434 = scalar_lea.vmem %s6, %s433
        $region56: #{tpu_custom_call.1} parent=35 // pred_fallthru
          _
        // Predicated region
        $region57: #{tpu_custom_call.1} parent=35 // pred_check
          %p435 = pneg %p233
        $region58: #{tpu_custom_call.1} parent=35 // pred_check_branch
          %437 = sbr.rel (%p435) target = $region60
        $region59: #{tpu_custom_call.1} parent=35 // pred_region
          %p438 = scmp.lt.s32.totalorder %s27, 3
          %s439 = scalar_select %p438, %s27, 3
          %s440 = scalar_lea.vmem %s7, %s439
        $region60: #{tpu_custom_call.1} parent=35 // pred_fallthru
          _
        // Predicated region
        $region61: #{tpu_custom_call.1} parent=35 // pred_check
          %p441 = pneg %p259
        $region62: #{tpu_custom_call.1} parent=35 // pred_check_branch
          %443 = sbr.rel (%p441) target = $region64
        $region63: #{tpu_custom_call.1} parent=35 // pred_region
          %p444 = scmp.lt.s32.totalorder %s27, 3
          %s445 = scalar_select %p444, %s27, 3
          %s446 = smul.addr %s445, 2
          %s447 = smul.addr %s446, 8
          %s448 = scalar_lea.vmem %s8, %s447
        $region64: #{tpu_custom_call.1} parent=35 // pred_fallthru
          _
      $region36: #{tpu_custom_call.1} parent=5 // pred_fallthru
        _
      %p449 = scmp.le.s32.totalorder 1, %s19
      %p450 = scmp.lt.s32.totalorder %s19, 5
      %p451 = pnand %p449, %p450
      %p452 = pneg %p451
      // Predicated region
      $region65: #{tpu_custom_call.1} parent=5 // pred_check
        _
      $region66: #{tpu_custom_call.1} parent=5 // pred_check_branch
        %454 = sbr.rel (%p451) target = $region68
      $region67: #{tpu_custom_call.1} parent=5 // pred_region
        %s455 = ssub.s32 %s19, 1
        %s456 = smul.u32 2, %s28
        %p457 = scmp.lt.s32.totalorder %s456, 1
        %s458 = scalar_select %p457, %s456, 1
        %s459 = smul.addr %s458, 8
        %s460 = scalar_lea.vmem %s0, %s459
        %p461 = pneg %p57
        %p462 = pneg %p54
        %s463 = smul.u32 2, %s28
        %p464 = scmp.lt.s32.totalorder %s463, 1
        %s465 = scalar_select %p464, %s463, 1
        %s466 = scalar_lea.vmem %s1, %s465
        %p467 = pneg %p83
        %p468 = pneg %p80
        %p469 = scmp.lt.s32.totalorder %s29, 3
        %s470 = scalar_select %p469, %s29, 3
        %s471 = smul.addr %s470, 4
        %s472 = smul.addr %s471, 8
        %s473 = scalar_lea.vmem %s2, %s472
        %p474 = pneg %p109
        %p475 = pneg %p106
        %p476 = scmp.lt.s32.totalorder %s29, 3
        %s477 = scalar_select %p476, %s29, 3
        %s478 = scalar_lea.vmem %s3, %s477
        %p479 = pneg %p135
        %p480 = pneg %p132
        %p481 = scmp.lt.s32.totalorder %s29, 3
        %s482 = scalar_select %p481, %s29, 3
        %s483 = smul.addr %s482, 4
        %s484 = smul.addr %s483, 8
        %s485 = scalar_lea.vmem %s4, %s484
        %p486 = pneg %p161
        %p487 = pneg %p158
        %p488 = scmp.lt.s32.totalorder %s29, 3
        %s489 = scalar_select %p488, %s29, 3
        %s490 = scalar_lea.vmem %s5, %s489
        %p491 = pneg %p187
        %p492 = pneg %p184
        %p493 = scmp.lt.s32.totalorder %s29, 3
        %s494 = scalar_select %p493, %s29, 3
        %s495 = smul.addr %s494, 4
        %s496 = smul.addr %s495, 8
        %s497 = scalar_lea.vmem %s6, %s496
        %p498 = pneg %p213
        %p499 = pneg %p210
        %p500 = scmp.lt.s32.totalorder %s29, 3
        %s501 = scalar_select %p500, %s29, 3
        %s502 = scalar_lea.vmem %s7, %s501
        %p503 = pneg %p239
        %p504 = pneg %p236
        %p505 = scmp.lt.s32.totalorder %s29, 3
        %s506 = scalar_select %p505, %s29, 3
        %s507 = smul.addr %s506, 2
        %s508 = smul.addr %s507, 8
        %s509 = scalar_lea.vmem %s8, %s508
        %p510 = pneg %p265
        %p511 = pneg %p262
        %p512 = pneg %p286
        %p513 = pneg %p283
        %p514 = pneg %p307
        %p515 = pneg %p304
        %p516 = pneg %p328
        %p517 = pneg %p325
        %p518 = pneg %p354
        %p519 = pneg %p351
        %s520 = smul.u32 2, %s28
        %p521 = scmp.lt.s32.totalorder %s520, 1
        %s522 = scalar_select %p521, %s520, 1
        %s523 = smul.addr %s522, 8
        %s524 = scalar_lea.vmem %s0, %s523
        %s525 = smul.u32 2, %s28
        %s526 = smul.u32 2, %s28
        %p527 = scmp.lt.s32.totalorder %s526, 1
        %s528 = scalar_select %p527, %s526, 1
        %s529 = scalar_lea.vmem %s1, %s528
        %s530 = smul.u32 2, %s28
        %p531 = scmp.lt.s32.totalorder %s29, 3
        %s532 = scalar_select %p531, %s29, 3
        %s533 = smul.addr %s532, 4
        %s534 = smul.addr %s533, 8
        %s535 = scalar_lea.vmem %s2, %s534
        %p536 = scmp.lt.s32.totalorder %s29, 3
        %s537 = scalar_select %p536, %s29, 3
        %s538 = scalar_lea.vmem %s3, %s537
        %p539 = scmp.lt.s32.totalorder %s29, 3
        %s540 = scalar_select %p539, %s29, 3
        %s541 = smul.addr %s540, 4
        %s542 = smul.addr %s541, 8
        %s543 = scalar_lea.vmem %s4, %s542
        %p544 = scmp.lt.s32.totalorder %s29, 3
        %s545 = scalar_select %p544, %s29, 3
        %s546 = scalar_lea.vmem %s5, %s545
        %p547 = scmp.lt.s32.totalorder %s29, 3
        %s548 = scalar_select %p547, %s29, 3
        %s549 = smul.addr %s548, 4
        %s550 = smul.addr %s549, 8
        %s551 = scalar_lea.vmem %s6, %s550
        %p552 = scmp.lt.s32.totalorder %s29, 3
        %s553 = scalar_select %p552, %s29, 3
        %s554 = scalar_lea.vmem %s7, %s553
        %p555 = scmp.lt.s32.totalorder %s29, 3
        %s556 = scalar_select %p555, %s29, 3
        %s557 = smul.addr %s556, 2
        %s558 = smul.addr %s557, 8
        %s559 = scalar_lea.vmem %s8, %s558
        %s560 = smul.u32 2, %s28
        %p562 = scmp.eq.s32.totalorder %s29, 0
        // Predicated region
        $region69: #{tpu_custom_call.1} parent=67 // pred_check
          %p563 = pneg %p562
        $region70: #{tpu_custom_call.1} parent=67 // pred_check_branch
          %565 = sbr.rel (%p563) target = $region72
        $region71: #{tpu_custom_call.1} parent=67 // pred_region
          %vm566 = vcmask 261120
          %567 = vst.msk [vmem:[#allocation2] sm:$0xff] %vm566, 0.0
          %568 = vst.msk [vmem:[#allocation2 + $0x8] sm:$0xff] %vm566, 0.0
        $region72: #{tpu_custom_call.1} parent=67 // pred_fallthru
          _
        %v569 = vld [vmem:[%s524] sm:$0xff]
        %v570 = vld [vmem:[%s524 + $0x8] sm:$0xff]
        %v571 = vpack.c.bf16 %v570, %v569
        %v572 = vld [vmem:[%s535] sm:$0xff]
        %v573 = vld [vmem:[%s535 + $0x8] sm:$0xff]
        %v574 = vld [vmem:[%s535 + $0x10] sm:$0xff]
        %v575 = vld [vmem:[%s535 + $0x18] sm:$0xff]
        %v576 = vpack.c.bf16 %v573, %v572
        %v577 = vpack.c.bf16 %v575, %v574
        %v578 = vld [vmem:[%s543] sm:$0xff]
        %v579 = vld [vmem:[%s543 + $0x8] sm:$0xff]
        %v580 = vld [vmem:[%s543 + $0x10] sm:$0xff]
        %v581 = vld [vmem:[%s543 + $0x18] sm:$0xff]
        %v582 = vpack.c.bf16 %v579, %v578
        %v583 = vpack.c.bf16 %v581, %v580
        %v584 = vld [vmem:[%s551] sm:$0xff]
        %v585 = vld [vmem:[%s551 + $0x8] sm:$0xff]
        %v586 = vld [vmem:[%s551 + $0x10] sm:$0xff]
        %v587 = vld [vmem:[%s551 + $0x18] sm:$0xff]
        %v588 = vpack.c.bf16 %v585, %v584
        %v589 = vpack.c.bf16 %v587, %v586
        %v590 = vld [vmem:[%s538] sm:$0x1]
        %v592 = vperm.slane %v590, 0
        %vm594 = vcmask 261120
        %v596 = vsel %vm594, %v571, 0
        %598 = vmatpush.bf16.msra.mxu0 0
        %599 = vmatpush.bf16.msra.mxu0 0
        %600 = vmatpush.bf16.msra.mxu0 0
        %601 = vmatpush.bf16.msra.mxu0 0
        %602 = vmatpush.bf16.msra.mxu0 0
        %603 = vmatpush.bf16.msra.mxu0 0
        %604 = vmatpush.bf16.msra.mxu0 %v577
        %605 = vmatpush.bf16.msra.mxu0 %v576
        %606 = vmatmul.bf16.gmra.mxu0 %v596
        %v607 = vpop.f32.mrf.mxu0
        %v608 = vadd.f32 %v592, %v607
        %v609 = vpop.f32.mrf.mxu0
        %v610 = vadd.f32 %v592, %v609
        %611 = vdwg.mxu0
        %v612 = vld [vmem:[%s546] sm:$0x1]
        %v614 = vperm.slane %v612, 0
        %616 = vmatpush.bf16.msra.mxu0 0
        %617 = vmatpush.bf16.msra.mxu0 0
        %618 = vmatpush.bf16.msra.mxu0 0
        %619 = vmatpush.bf16.msra.mxu0 0
        %620 = vmatpush.bf16.msra.mxu0 0
        %621 = vmatpush.bf16.msra.mxu0 0
        %622 = vmatpush.bf16.msra.mxu0 %v583
        %623 = vmatpush.bf16.msra.mxu0 %v582
        %624 = vmatmul.bf16.gmra.mxu0 %v596
        %v625 = vpop.f32.mrf.mxu0
        %v626 = vadd.f32 %v614, %v625
        %v627 = vpop.f32.mrf.mxu0
        %v628 = vadd.f32 %v614, %v627
        %629 = vdwg.mxu0
        %v630 = vld [vmem:[%s554] sm:$0x1]
        %v632 = vperm.slane %v630, 0
        %634 = vmatpush.bf16.msra.mxu0 0
        %635 = vmatpush.bf16.msra.mxu0 0
        %636 = vmatpush.bf16.msra.mxu0 0
        %637 = vmatpush.bf16.msra.mxu0 0
        %638 = vmatpush.bf16.msra.mxu0 0
        %639 = vmatpush.bf16.msra.mxu0 0
        %640 = vmatpush.bf16.msra.mxu0 %v589
        %641 = vmatpush.bf16.msra.mxu0 %v588
        %642 = vmatmul.bf16.gmra.mxu0 %v596
        %v643 = vpop.f32.mrf.mxu0
        %v644 = vadd.f32 %v632, %v643
        %v645 = vpop.f32.mrf.mxu0
        %v646 = vadd.f32 %v632, %v645
        %647 = vdwg.mxu0
        %v648 = vmul.f32 %v608, 0.35355338
        %v649 = vmul.f32 %v610, 0.35355338
        %v650 = vpack.c.bf16 %v648, %v648
        %v651 = vpack.c.bf16 %v649, %v649
        %v652 = vpack.c.bf16 %v626, %v626
        %v653 = vpack.c.bf16 %v628, %v628
        %v654 = vpack.c.bf16 %v644, %v644
        %v655 = vpack.c.bf16 %v646, %v646
        %vm656 = vcmask 130048
        %v658 = vsel %vm656, %v650, 0
        %v661 = vsel %vm656, %v652, 0
        %663 = vmatpush.bf16.xpose.msra.mxu0 0
        %664 = vmatpush.bf16.xpose.msra.mxu0 0
        %665 = vmatpush.bf16.xpose.msra.mxu0 0
        %666 = vmatpush.bf16.xpose.msra.mxu0 0
        %667 = vmatpush.bf16.xpose.msra.mxu0 0
        %668 = vmatpush.bf16.xpose.msra.mxu0 0
        %669 = vmatpush.bf16.xpose.msra.mxu0 0
        %670 = vmatpush.bf16.xpose.msra.mxu0 %v661
        %671 = vmatmul.bf16.gmra.mxu0 %v658
        %v672 = vpop.f32.mrf.mxu0
        %v673 = vadd.f32 0.0, %v672
        %v674 = vpop.f32.mrf.mxu0
        %675 = vdwg.mxu0
        %v677 = vsel %vm656, %v651, 0
        %v680 = vsel %vm656, %v653, 0
        %682 = vmatpush.bf16.xpose.msra.mxu0 0
        %683 = vmatpush.bf16.xpose.msra.mxu0 0
        %684 = vmatpush.bf16.xpose.msra.mxu0 0
        %685 = vmatpush.bf16.xpose.msra.mxu0 0
        %686 = vmatpush.bf16.xpose.msra.mxu0 0
        %687 = vmatpush.bf16.xpose.msra.mxu0 0
        %688 = vmatpush.bf16.xpose.msra.mxu0 0
        %689 = vmatpush.bf16.xpose.msra.mxu0 %v680
        %690 = vmatmul.bf16.gmra.mxu0 %v677
        %v691 = vpop.f32.mrf.mxu0
        %v692 = vadd.f32 0.0, %v691
        %v693 = vpop.f32.mrf.mxu0
        %694 = vdwg.mxu0
        %v695 = vld [vmem:[%s529] sm:$0x1]
        %v696 = vld [vmem:[%s529 + $0x1] sm:$0x1]
        %vm697 = vcmp.eq.s32.totalorder %v695, 0
        %vm698 = vcmp.eq.s32.totalorder %v696, 0
        %v699 = vsel %vm697, 1, 0
        %v700 = vsel %vm698, 1, 0
        %v701 = vperm.slane %v699, 0
        %v702 = vperm.slane %v700, 0
        %vm703 = vcmp.eq.s32.totalorder %v701, 1
        %vm704 = vcmp.eq.s32.totalorder %v702, 1
        %v705 = vsel %vm703, -1e+09, %v673
        %v706 = vsel %vm704, -1e+09, %v692
        %vm707 = vcmask 64512
        %v708 = vsel %vm707, %v705, -inf
        %709 = vmax.xlane.f32.xlu0 %v708
        %v710 = vpop.xlane.xlu0 %709
        %v711 = vsel %vm707, %v706, -inf
        %712 = vmax.xlane.f32.xlu0 %v711
        %v713 = vpop.xlane.xlu0 %712
        %v714 = vsub.f32 %v705, %v710
        %v715 = vsub.f32 %v706, %v713
        %v716 = vmul.f32 %v714, 1.442695
        %v717 = vpow.pop %v716
        %v718 = vmul.f32 %v715, 1.442695
        %v719 = vpow.pop %v718
        %v720 = vsel %vm707, %v717, 0.0
        %721 = vadd.xlane.f32.xlu0 %v720
        %v722 = vpop.xlane.xlu0 %721
        %v723 = vsel %vm707, %v719, 0.0
        %724 = vadd.xlane.f32.xlu0 %v723
        %v725 = vpop.xlane.xlu0 %724
        %v726 = vpack.c.bf16 %v717, %v717
        %v727 = vpack.c.bf16 %v719, %v719
        %v729 = vsel %vm707, %v726, 0
        %vm731 = vcmask 1043456
        %v733 = vsel %vm731, %v654, 0
        %735 = vmatpush.bf16.msra.mxu0 0
        %736 = vmatpush.bf16.msra.mxu0 0
        %737 = vmatpush.bf16.msra.mxu0 0
        %738 = vmatpush.bf16.msra.mxu0 0
        %739 = vmatpush.bf16.msra.mxu0 0
        %740 = vmatpush.bf16.msra.mxu0 0
        %741 = vmatpush.bf16.msra.mxu0 0
        %742 = vmatpush.bf16.msra.mxu0 %v733
        %743 = vmatmul.bf16.gmra.mxu0 %v729
        %v744 = vpop.f32.mrf.mxu0
        %v745 = vadd.f32 0.0, %v744
        %v746 = vpop.f32.mrf.mxu0
        %747 = vdwg.mxu0
        %v749 = vsel %vm707, %v727, 0
        %v752 = vsel %vm731, %v655, 0
        %754 = vmatpush.bf16.msra.mxu0 0
        %755 = vmatpush.bf16.msra.mxu0 0
        %756 = vmatpush.bf16.msra.mxu0 0
        %757 = vmatpush.bf16.msra.mxu0 0
        %758 = vmatpush.bf16.msra.mxu0 0
        %759 = vmatpush.bf16.msra.mxu0 0
        %760 = vmatpush.bf16.msra.mxu0 0
        %761 = vmatpush.bf16.msra.mxu0 %v752
        %762 = vmatmul.bf16.gmra.mxu0 %v749
        %v763 = vpop.f32.mrf.mxu0
        %v764 = vadd.f32 0.0, %v763
        %v765 = vpop.f32.mrf.mxu0
        %766 = vdwg.mxu0
        %v767 = vrcp.pop %v722
        %v768 = vrcp.pop %v725
        %v769 = vmul.f32 %v745, %v767
        %v770 = vmul.f32 %v764, %v768
        %v771 = vpack.c.bf16 %v770, %v769
        %v772 = vld [vmem:[%s559] sm:$0xff]
        %v773 = vld [vmem:[%s559 + $0x8] sm:$0xff]
        %v774 = vpack.c.bf16 %v773, %v772
        %v775 = vld [vmem:[#allocation2] sm:$0xff]
        %v776 = vld [vmem:[#allocation2 + $0x8] sm:$0xff]
        %v778 = vsel %vm656, %v771, 0
        %780 = vmatpush.bf16.msra.mxu0 0
        %781 = vmatpush.bf16.msra.mxu0 0
        %782 = vmatpush.bf16.msra.mxu0 0
        %783 = vmatpush.bf16.msra.mxu0 0
        %784 = vmatpush.bf16.msra.mxu0 0
        %785 = vmatpush.bf16.msra.mxu0 0
        %786 = vmatpush.bf16.msra.mxu0 0
        %787 = vmatpush.bf16.msra.mxu0 %v774
        %788 = vmatmul.bf16.gmra.mxu0 %v778
        %v789 = vpop.f32.mrf.mxu0
        %v790 = vadd.f32 0.0, %v789
        %v791 = vpop.f32.mrf.mxu0
        %v792 = vadd.f32 0.0, %v791
        %793 = vdwg.mxu0
        %v794 = vadd.f32 %v775, %v790
        %v795 = vadd.f32 %v776, %v792
        %796 = vst.msk [vmem:[#allocation2] sm:$0xff] %vm594, %v794
        %797 = vst.msk [vmem:[#allocation2 + $0x8] sm:$0xff] %vm594, %v795
        %p798 = scmp.eq.s32.totalorder %s29, 3
        // Predicated region
        $region73: #{tpu_custom_call.1} parent=67 // pred_check
          %p799 = pneg %p798
        $region74: #{tpu_custom_call.1} parent=67 // pred_check_branch
          %801 = sbr.rel (%p799) target = $region76
        $region75: #{tpu_custom_call.1} parent=67 // pred_region
          %v802 = vld [vmem:[#allocation2] sm:$0xff]
          %v803 = vld [vmem:[#allocation2 + $0x8] sm:$0xff]
          %v804 = vld [vmem:[%s9] sm:$0x1]
          %v806 = vperm.slane %v804, 0
          %v808 = vadd.f32 %v802, %v806
          %v809 = vadd.f32 %v803, %v806
          %v810 = vsel %vm594, %v808, 0.0
          %811 = vadd.xlane.f32.xlu0 %v810
          %v812 = vpop.xlane.xlu0 %811
          %v813 = vsel %vm594, %v809, 0.0
          %814 = vadd.xlane.f32.xlu0 %v813
          %v815 = vpop.xlane.xlu0 %814
          %v816 = vrcp.pop 32.0
          %v817 = vmul.f32 32.0, %v816
          %v818 = vsub.f32 1.0, %v817
          %v819 = vmul.f32 %v816, %v818
          %v820 = vadd.f32 %v816, %v819
          %vm821 = vweird.f32 %v816
          %v822 = vsel %vm821, %v816, %v820
          %v823 = vmul.f32 %v812, %v822
          %v824 = vmul.f32 %v815, %v822
          %v825 = vsub.f32 %v808, %v823
          %v826 = vsub.f32 %v809, %v824
          %v827 = vmul.f32 %v825, %v825
          %v828 = vmul.f32 %v826, %v826
          %v829 = vsel %vm594, %v827, 0.0
          %830 = vadd.xlane.f32.xlu0 %v829
          %v831 = vpop.xlane.xlu0 %830
          %v832 = vsel %vm594, %v828, 0.0
          %833 = vadd.xlane.f32.xlu0 %v832
          %v834 = vpop.xlane.xlu0 %833
          %v835 = vmul.f32 %v831, %v822
          %v836 = vmul.f32 %v834, %v822
          %v837 = vadd.f32 %v835, 1e-05
          %v838 = vadd.f32 %v836, 1e-05
          %v839 = vrsqrt.pop %v837
          %v840 = vmul.f32 %v839, %v837
          %v841 = vmul.f32 %v840, %v839
          %v842 = vmul.f32 0.5, %v841
          %v843 = vsub.f32 1.5, %v842
          %v844 = vmul.f32 %v839, %v843
          %vm845 = vweird.f32 %v837
          %vm846 = vweird.f32 %v839
          %vm847 = vmor %vm845, %vm846
          %v848 = vsel %vm847, %v839, %v844
          %v849 = vrsqrt.pop %v838
          %v850 = vmul.f32 %v849, %v838
          %v851 = vmul.f32 %v850, %v849
          %v852 = vmul.f32 0.5, %v851
          %v853 = vsub.f32 1.5, %v852
          %v854 = vmul.f32 %v849, %v853
          %vm855 = vweird.f32 %v838
          %vm856 = vweird.f32 %v849
          %vm857 = vmor %vm855, %vm856
          %v858 = vsel %vm857, %v849, %v854
          %v859 = vmul.f32 %v825, %v848
          %v860 = vmul.f32 %v826, %v858
          %v861 = vld [vmem:[%s10] sm:$0x1]
          %v863 = vperm.slane %v861, 0
          %v865 = vmul.f32 %v859, %v863
          %v866 = vmul.f32 %v860, %v863
          %v867 = vld [vmem:[%s11] sm:$0x1]
          %v869 = vperm.slane %v867, 0
          %v871 = vadd.f32 %v865, %v869
          %v872 = vadd.f32 %v866, %v869
          %873 = vst.msk [vmem:[#allocation3] sm:$0xff] %vm594, %v871
          %874 = vst.msk [vmem:[#allocation3 + $0x8] sm:$0xff] %vm594, %v872
        $region76: #{tpu_custom_call.1} parent=67 // pred_fallthru
          _
        // Predicated region
        $region77: #{tpu_custom_call.1} parent=67 // pred_check
          %p875 = pneg %p351
        $region78: #{tpu_custom_call.1} parent=67 // pred_check_branch
          %877 = sbr.rel (%p875) target = $region80
        $region79: #{tpu_custom_call.1} parent=67 // pred_region
          %s878 = smul.u32 2, %s28
          %880 = vsyncadd [#allocation4], 0
          %s881 = smul.addr %s878, 8
          %s882 = scalar_lea.hbm %s12, %s881
          %s883 = sshll.u32 [#allocation3], 4
          %s884 = int_to_ptr.vmem [resolvable:$true] %s883
          %s885 = sshll.u32 %s882, 4
          %s886 = int_to_ptr.hbm [resolvable:$true] %s885
          %891 = dma.vmem_to_hbm [thread:$0]  %s884, 256, %s886, [#allocation4], 128, 128, 8
        $region80: #{tpu_custom_call.1} parent=67 // pred_fallthru
          _
        // Predicated region
        $region81: #{tpu_custom_call.1} parent=67 // pred_check
          %p892 = pneg %p351
        $region82: #{tpu_custom_call.1} parent=67 // pred_check_branch
          %894 = sbr.rel (%p892) target = $region84
        $region83: #{tpu_custom_call.1} parent=67 // pred_region
          %896 = dma.done [#allocation4], 256
        $region84: #{tpu_custom_call.1} parent=67 // pred_fallthru
          _
      $region68: #{tpu_custom_call.1} parent=5 // pred_fallthru
        _
      %p897 = scmp.le.s32.totalorder 2, %s19
      // Predicated region
      $region85: #{tpu_custom_call.1} parent=5 // pred_check
        %p898 = pneg %p897
      $region86: #{tpu_custom_call.1} parent=5 // pred_check_branch
        %900 = sbr.rel (%p898) target = $region88
      $region87: #{tpu_custom_call.1} parent=5 // pred_region
        %s901 = ssub.s32 %s19, 2
      $region88: #{tpu_custom_call.1} parent=5 // pred_fallthru
        _
    $region6: #{tpu_custom_call.1} parent=1 // loop_footer
      %s23 = sadd.s32 1, %s19
    $region7: #{tpu_custom_call.1} parent=1 // loop_footer_branch
      %18 = sbr.rel target = $region3
    $region8: #{tpu_custom_call.1} parent=1 // loop_exit
      _
    %902 = vsyncpa [#allocation4], 1
    %s903 = scalar_lea.sflag [#allocation4], 1
    %904 = vsyncpa %s903, 1

</llo_original>
